<compile_context>
chip_gen: v7x
topology: tpu7x:2x2x1
jax: 0.10.0
libtpu: 0.0.40
codegen_flags: <defaults>
</compile_context>

<pallas_src>
import math

import jax
import jax.numpy as jnp
from jax.experimental import pallas as pl
from jax.experimental.pallas import tpu as pltpu


def _round_up(x, m):
    return ((x + m - 1) // m) * m


def _styled_conv_kernel(nw_ref, w_ref, patch_ref, noise_ref, bias_ref, o_ref):
    # nw_ref:    (1,)            SMEM scalar: NoiseInjection weight
    # w_ref:     (Cout, R_pad)   bf16 demod-folded im2col weight (grid-invariant)
    # patch_ref: (R_pad, tile_n) bf16 modulated im2col tile (lanes = batch*spatial)
    # noise_ref: (1, tile_n)     f32 raw noise tile
    # bias_ref:  (Cout, 1)       f32 per-channel bias
    # o_ref:     (Cout, tile_n)  f32 lane-dense output tile
    y = jnp.dot(w_ref[...], patch_ref[...],
                preferred_element_type=jnp.float32)             # single MXU matmul, f32 acc
    # f32 VPU epilogue: bias + noise injection, then LeakyReLU(0.2); store once.
    y = y + bias_ref[...] + nw_ref[0] * noise_ref[...]
    o_ref[...] = jnp.where(y > 0.0, y, 0.2 * y).astype(o_ref.dtype)


def styled_conv2d_forward(x, style, noise, params, *, tile_n=256):
    """x: (B, Cin, H, W), style: (B, S), noise: (B, 1, H, W). Returns (B, Cout, H, W)."""
    f32, bf16 = jnp.float32, jnp.bfloat16
    B, Cin, H, W = x.shape
    Cout, _, K, _ = params["weight"].shape
    # NOTE: matches F.conv2d(padding=K//2); exact only for odd K (as the module intends).
    pad = K // 2
    HW = H * W
    N = B * HW
    scale = 1.0 / math.sqrt(Cin * K * K)
    Rc = K * K * Cin
    R_pad = _round_up(Rc, 128)                 # full MXU contraction tiles, unmasked loads
    tile_n = min(tile_n, _round_up(N, 128))    # lane tile: multiple of 128
    N_pad = _round_up(N, tile_n)

    w = params["weight"].astype(f32)                                         # (Cout, Cin, K, K)

    # ---- batch-invariant demodulation (fixed style_inv buffer, exactly like the module),
    #      hoisted to the wrapper and folded into the weight ----
    demod = jax.lax.rsqrt(
        jnp.sum((scale * params["style_inv"].reshape(1, Cin, 1, 1).astype(f32) * w) ** 2,
                axis=(1, 2, 3)) + 1e-8)                                      # (Cout,)

    # ---- weight repack: (Cout,Cin,K,K) -> (Cout, K*K*Cin), row r = (kh*K+kw)*Cin + ci ----
    w2 = jnp.transpose(w, (0, 2, 3, 1)).reshape(Cout, Rc) * demod[:, None]
    w_aug = jnp.pad(w2, ((0, 0), (0, R_pad - Rc))).astype(bf16)              # (Cout, R_pad) bf16

    # ---- per-sample modulation folded into the activations (fused XLA elementwise) ----
    mod = scale * (style.astype(f32) @ params["mod_w"].astype(f32).T
                   + params["mod_b"].astype(f32))                            # (B, Cin)
    x_mod = x.astype(f32) * mod[:, :, None, None]

    # ---- im2col: patch[(kh*K+kw)*Cin+ci, b*HW + y*W + x] = x_pad[b, ci, y+kh, x+kw] ----
    x_p = jnp.pad(x_mod, ((0, 0), (0, 0), (pad, pad), (pad, pad)))
    taps = [x_p[:, :, kh:kh + H, kw:kw + W].reshape(B, Cin, HW)
            for kh in range(K) for kw in range(K)]
    patch = jnp.concatenate(taps, axis=1)                                    # (B, Rc, HW)
    patch = jnp.transpose(patch, (1, 0, 2)).reshape(Rc, N)                   # (Rc, B*HW)
    patch_aug = jnp.pad(patch, ((0, R_pad - Rc), (0, N_pad - N))).astype(bf16)

    noise_flat = jnp.pad(noise.astype(f32).reshape(1, N), ((0, 0), (0, N_pad - N)))
    bias_col = params["bias"].reshape(Cout, 1).astype(f32)
    noise_w = params["noise_w"].reshape(1).astype(f32)

    out_flat = pl.pallas_call(
        _styled_conv_kernel,
        out_shape=jax.ShapeDtypeStruct((Cout, N_pad), f32),
        grid=(N_pad // tile_n,),
        in_specs=[
            pl.BlockSpec(memory_space=pltpu.MemorySpace.SMEM),               # noise_w scalar
            # TODO(synk): on v7x mark this grid-invariant weight pipeline_mode=pl.Buffered(1)
            # to skip the second (never-used) weight buffer under its 64 MiB VMEM.
            pl.BlockSpec((Cout, R_pad), lambda n: (0, 0)),                   # packed weight
            pl.BlockSpec((R_pad, tile_n), lambda n: (0, n)),                 # im2col tile
            pl.BlockSpec((1, tile_n), lambda n: (0, n)),                     # raw noise tile
            pl.BlockSpec((Cout, 1), lambda n: (0, 0)),                       # bias column
        ],
        out_specs=pl.BlockSpec((Cout, tile_n), lambda n: (0, n)),            # lane-dense output
        compiler_params=pltpu.CompilerParams(
            dimension_semantics=("parallel",),
            vmem_limit_bytes=32 * 1024 * 1024,
        ),
    )(noise_w, w_aug, patch_aug, noise_flat, bias_col)

    out = out_flat[:, :N].reshape(Cout, B, H, W)
    return jnp.transpose(out, (1, 0, 2, 3))


def ref_forward(x, style, noise, params):
    """Pure-JAX f32 reference mirroring the PyTorch forward exactly (NCHW)."""
    Cout, Cin, K, _ = params["weight"].shape
    scale = 1.0 / math.sqrt(Cin * K * K)
    mod = scale * (style @ params["mod_w"].T + params["mod_b"])              # (B, Cin)
    xm = x * mod[:, :, None, None]
    y = jax.lax.conv_general_dilated(
        xm, params["weight"], window_strides=(1, 1), padding="SAME",
        dimension_numbers=("NCHW", "OIHW", "NCHW"))
    demod = jax.lax.rsqrt(
        jnp.sum((scale * params["style_inv"] * params["weight"][None]) ** 2,
                axis=(2, 3, 4)) + 1e-8)                                      # (1, Cout)
    y = y * demod[:, :, None, None]
    y = y + params["noise_w"] * noise
    y = y + params["bias"]
    return jnp.where(y > 0, y, 0.2 * y)


if __name__ == "__main__":
    B, CIN, COUT, H, W, S, K = 2, 4, 8, 16, 16, 8, 3

    key = jax.random.PRNGKey(0)
    ks = jax.random.split(key, 7)
    x = jax.random.normal(ks[0], (B, CIN, H, W), jnp.float32)
    style = jax.random.normal(ks[1], (B, S), jnp.float32)
    # TODO(synk): PyTorch draws noise internally when noise=None; here noise is always
    # passed explicitly (deterministic) instead of using in-kernel pltpu RNG.
    noise = jax.random.normal(ks[2], (B, 1, H, W), jnp.float32)

    params = {
        "weight": jax.random.normal(ks[3], (COUT, CIN, K, K), jnp.float32),       # randn init
        "mod_w": jax.random.normal(ks[4], (CIN, S), jnp.float32) / math.sqrt(S),  # Linear weight
        "mod_b": jnp.ones((CIN,), jnp.float32),                                   # bias filled 1.0
        "style_inv": jax.random.normal(ks[5], (1, 1, CIN, 1, 1), jnp.float32),    # buffer randn
        # the module inits these to zero; use nonzero values so the bias/noise paths are exercised
        "noise_w": jnp.full((1,), 0.25, jnp.float32),
        "bias": 0.1 * jax.random.normal(ks[6], (1, COUT, 1, 1), jnp.float32),
    }

    out = styled_conv2d_forward(x, style, noise, params)
    out = jax.block_until_ready(out)

    ref = ref_forward(x, style, noise, params)
    assert out.shape == (B, COUT, H, W), out.shape
    # bf16 MXU operands with f32 accumulation and an f32 bias/noise epilogue: the tolerance
    # reflects bf16 rounding of the conv contribution only (per the review guidance).
    assert jnp.allclose(out, ref, atol=5e-2, rtol=5e-2), float(jnp.max(jnp.abs(out - ref)))
    print("KERNEL_OK")
</pallas_src>

<mosaic_0001>
module attributes {stable_mosaic.version = 11 : i64} {
  func.func @_styled_conv_kernel(%arg0: i32, %arg1: memref<1xf32, #tpu.memory_space<smem>>, %arg2: memref<8x128xbf16, #tpu.memory_space<vmem>>, %arg3: memref<128x256xbf16, #tpu.memory_space<vmem>>, %arg4: memref<1x256xf32, #tpu.memory_space<vmem>>, %arg5: memref<8x1xf32, #tpu.memory_space<vmem>>, %arg6: memref<8x256xf32, #tpu.memory_space<vmem>>) attributes {dimension_semantics = [#tpu.dimension_semantics<parallel>], iteration_bounds = array<i64: 2>, scalar_prefetch = 0 : i64, scratch_operands = 0 : i64, tpu.core_type = #tpu.core_type<tc>, window_params = [{transform_indices = @transform_0, window_bounds = array<i64: 1>}, {pipeline_mode = #tpu.pipeline_mode<synchronous>, transform_indices = @transform_1, window_bounds = array<i64: 8, 128>}, {transform_indices = @transform_2, window_bounds = array<i64: 128, 256>}, {transform_indices = @transform_3, window_bounds = array<i64: 1, 256>}, {pipeline_mode = #tpu.pipeline_mode<synchronous>, transform_indices = @transform_4, window_bounds = array<i64: 8, 1>}, {transform_indices = @transform_5, window_bounds = array<i64: 8, 256>}]} {
    %c0 = arith.constant 0 : index
    %c0_0 = arith.constant 0 : index
    %0 = vector.load %arg2[%c0, %c0_0] : memref<8x128xbf16, #tpu.memory_space<vmem>>, vector<8x128xbf16>
    %c0_1 = arith.constant 0 : index
    %c0_2 = arith.constant 0 : index
    %1 = vector.load %arg3[%c0_1, %c0_2] : memref<128x256xbf16, #tpu.memory_space<vmem>>, vector<128x256xbf16>
    %cst = arith.constant dense<0.000000e+00> : vector<8x256xf32>
    %2 = tpu.matmul %0, %1, %cst {dimension_numbers = #tpu.dot_dimension_numbers<[1], [0], [0], [1], [0, 0, 1, 1], [], []>} : vector<8x128xbf16>, vector<128x256xbf16>, vector<8x256xf32> -> vector<8x256xf32>
    %c0_3 = arith.constant 0 : index
    %c0_4 = arith.constant 0 : index
    %3 = vector.load %arg5[%c0_3, %c0_4] : memref<8x1xf32, #tpu.memory_space<vmem>>, vector<8x1xf32>
    %4 = vector.broadcast %3 : vector<8x1xf32> to vector<8x256xf32>
    %5 = arith.addf %2, %4 : vector<8x256xf32>
    %c0_5 = arith.constant 0 : index
    %6 = memref.load %arg1[%c0_5] : memref<1xf32, #tpu.memory_space<smem>>
    %c0_6 = arith.constant 0 : index
    %c0_7 = arith.constant 0 : index
    %7 = vector.load %arg4[%c0_6, %c0_7] : memref<1x256xf32, #tpu.memory_space<vmem>>, vector<1x256xf32>
    %8 = vector.broadcast %6 : f32 to vector<1x256xf32>
    %9 = arith.mulf %8, %7 : vector<1x256xf32>
    %10 = vector.broadcast %9 : vector<1x256xf32> to vector<8x256xf32>
    %11 = arith.addf %5, %10 : vector<8x256xf32>
    %cst_8 = arith.constant 0.000000e+00 : f32
    %12 = vector.broadcast %cst_8 : f32 to vector<8x256xf32>
    %13 = arith.cmpf ogt, %11, %12 : vector<8x256xf32>
    %cst_9 = arith.constant 2.000000e-01 : f32
    %14 = vector.broadcast %cst_9 : f32 to vector<8x256xf32>
    %15 = arith.mulf %14, %11 : vector<8x256xf32>
    %16 = arith.select %13, %11, %15 : vector<8x256xi1>, vector<8x256xf32>
    %c0_10 = arith.constant 0 : index
    %c0_11 = arith.constant 0 : index
    %17 = vector.load %arg6[%c0_10, %c0_11] : memref<8x256xf32, #tpu.memory_space<vmem>>, vector<8x256xf32>
    tpu.vector_store %arg6[%c0_10, %c0_11], %16 {strides = array<i32>} : memref<8x256xf32, #tpu.memory_space<vmem>>, vector<8x256xf32>,
    return
  }
  func.func @transform_0(%arg0: i32) -> i32 {
    %c0_i32 = arith.constant 0 : i32
    %c0_i32_0 = arith.constant 0 : i32
    return %c0_i32 : i32
  }
  func.func @transform_1(%arg0: i32) -> (i32, i32) {
    %c0_i32 = arith.constant 0 : i32
    %c0_i32_0 = arith.constant 0 : i32
    %c0_i32_1 = arith.constant 0 : i32
    return %c0_i32, %c0_i32_0 : i32, i32
  }
  func.func @transform_2(%arg0: i32) -> (i32, i32) {
    %c0_i32 = arith.constant 0 : i32
    %c0_i32_0 = arith.constant 0 : i32
    return %c0_i32, %arg0 : i32, i32
  }
  func.func @transform_3(%arg0: i32) -> (i32, i32) {
    %c0_i32 = arith.constant 0 : i32
    %c0_i32_0 = arith.constant 0 : i32
    return %c0_i32, %arg0 : i32, i32
  }
  func.func @transform_4(%arg0: i32) -> (i32, i32) {
    %c0_i32 = arith.constant 0 : i32
    %c0_i32_0 = arith.constant 0 : i32
    %c0_i32_1 = arith.constant 0 : i32
    return %c0_i32, %c0_i32_0 : i32, i32
  }
  func.func @transform_5(%arg0: i32) -> (i32, i32) {
    %c0_i32 = arith.constant 0 : i32
    %c0_i32_0 = arith.constant 0 : i32
    return %c0_i32, %arg0 : i32, i32
  }
}

</mosaic_0001>

<llo_original>
// kernel: tpu_custom_call.1
$region0: #{tpu_custom_call.1}
  #allocation0 [shape = 'u32[]', space=smem, size = 0x4, offset = 0x4, fixed_abs, tag = 'smem constant byte address 0x4 - core index']
  #allocation1 [shape = 'u32[144,128]{1,0:T(1,128)}', space=vmem, size = 0x12000, scoped, tag = 'internal scratch']
  #allocation2 [shape = 'f32[1]{0:T(128)S(6)}', space=smem, size = 0x200, scoped, tag = 'scoped memory for tpu_custom_call.1']
  %s0 = inlined_call_operand.<no memory space> [shape: f32[1], index: 0, kind: input, shape index: {}]
  %s1 = inlined_call_operand.vmem [shape: bf16[8,128], index: 1, kind: input, shape index: {}]
  %s2 = inlined_call_operand.hbm [shape: bf16[128,512], index: 2, kind: input, shape index: {}]
  %s3 = inlined_call_operand.vmem [shape: f32[1,512], index: 3, kind: input, shape index: {}]
  %s4 = inlined_call_operand.vmem [shape: f32[8,1], index: 4, kind: input, shape index: {}]
  %s5 = inlined_call_operand.hbm [shape: f32[8,512], index: 5, kind: output, shape index: {}]
  %s6 = sld [smem:[#allocation0]]
  $region57: #{tpu_custom_call.1} parent=0
    _
  %s8 = ssub.s32 1, %s6
  %s9 = scalar_select 0, %s8, %s6
  %10 = sst [smem:[#allocation2]] %s0
  $region1: #{tpu_custom_call.1} parent=0
    #allocation3 [shape = 'u8[131072]{0}', space=vmem, size = 0x20000, scoped, tag = 'input window, operand 2']
    #allocation4 [shape = 's32[2]{0}', space=sflag, size = 0x8, scoped, tag = 'scoped memory for tpu_custom_call.1']
    #allocation5 [shape = 's32[2]{0}', space=sflag, size = 0x8, scoped, tag = 'scoped memory for tpu_custom_call.1']
    #allocation6 [shape = 'u8[16384]{0}', space=vmem, size = 0x4000, scoped, tag = 'output window, operand 0']
    %11 = vsyncpa [#allocation4], 0
    %s12 = scalar_lea.sflag [#allocation4], 1
    %13 = vsyncpa %s12, 0
    %14 = vsyncpa [#allocation5], 0
    %s15 = scalar_lea.sflag [#allocation5], 1
    %16 = vsyncpa %s15, 0
    loop: start=0, step=1, limit=4
    $region2: #{tpu_custom_call.1} parent=1 // loop_pre_header
      _
    $region3: #{tpu_custom_call.1} parent=1 // loop_header
      %s18 = sphi 0, %s22
      %p19 = scmp.ge.s32.totalorder %s18, 4
      %s26 = sphi 0, %s26
      %s28 = sphi 0, %s26
      %s29 = sphi 0, %s28
      %s43 = sphi 0, %s29
      %s47 = sphi 0, %s47
      %s49 = sphi 0, %s47
      %s50 = sphi 0, %s49
      %s64 = sphi 0, %s50
      %s70 = sphi 0, %s72
      %s73 = sphi 0, %s70
      %s74 = sphi 0, %s73
      %s90 = sphi 0, %s74
      %s96 = sphi 0, %s98
      %s99 = sphi 0, %s96
      %s100 = sphi 0, %s99
      %s116 = sphi 0, %s100
      %s120 = sphi 0, %s120
      %s122 = sphi 0, %s120
      %s123 = sphi 0, %s122
      %s137 = sphi 0, %s123
      %s143 = sphi 0, %s145
      %s146 = sphi 0, %s143
      %s147 = sphi 0, %s146
      %s163 = sphi 0, %s147
    $region4: #{tpu_custom_call.1} parent=1 // loop_header_branch
      %21 = sbr.rel (%p19) target = $region8
    $region5: #{tpu_custom_call.1} parent=1 // loop_body
      %s23 = ssub.s32 %s18, 1
      %s24 = ssub.s32 %s18, 2
      %s25 = sadd.s32 %s18, 1
      %s27 = sadd.s32 %s26, 1
      %p30 = scmp.eq.s32.totalorder %s18, 1
      %p31 = scmp.ne.s32.totalorder %s26, %s28
      %p32 = scmp.eq.s32.totalorder %s18, 0
      %p33 = por %p31, %p32
      %p34 = scmp.ne.s32.totalorder %s26, %s28
      %p35 = scmp.eq.s32.totalorder %s23, 1
      %p36 = por %p34, %p35
      %p37 = scmp.ne.s32.totalorder %s28, %s29
      %p38 = scmp.eq.s32.totalorder %s23, 0
      %p39 = por %p37, %p38
      %p40 = scmp.ne.s32.totalorder %s28, %s29
      %p41 = scmp.eq.s32.totalorder %s24, 1
      %p42 = por %p40, %p41
      %p44 = scmp.ne.s32.totalorder %s29, %s43
      %p45 = scmp.eq.s32.totalorder %s24, 0
      %p46 = por %p44, %p45
      %s48 = sadd.s32 %s47, 1
      %p51 = scmp.eq.s32.totalorder %s18, 1
      %p52 = scmp.ne.s32.totalorder %s47, %s49
      %p53 = scmp.eq.s32.totalorder %s18, 0
      %p54 = por %p52, %p53
      %p55 = scmp.ne.s32.totalorder %s47, %s49
      %p56 = scmp.eq.s32.totalorder %s23, 1
      %p57 = por %p55, %p56
      %p58 = scmp.ne.s32.totalorder %s49, %s50
      %p59 = scmp.eq.s32.totalorder %s23, 0
      %p60 = por %p58, %p59
      %p61 = scmp.ne.s32.totalorder %s49, %s50
      %p62 = scmp.eq.s32.totalorder %s24, 1
      %p63 = por %p61, %p62
      %p65 = scmp.ne.s32.totalorder %s50, %s64
      %p66 = scmp.eq.s32.totalorder %s24, 0
      %p67 = por %p65, %p66
      %s68 = ssub.s32 %s18, %s25
      %p69 = scmp.eq.s32.totalorder %s68, 0
      %s71 = sadd.s32 %s70, 1
      %s72 = scalar_select %p69, %s70, %s71
      %p75 = pneg %p69
      %p76 = scmp.eq.s32.totalorder %s18, 1
      %p77 = por %p75, %p76
      %p78 = scmp.ne.s32.totalorder %s70, %s73
      %p79 = scmp.eq.s32.totalorder %s18, 0
      %p80 = por %p78, %p79
      %p81 = scmp.ne.s32.totalorder %s70, %s73
      %p82 = scmp.eq.s32.totalorder %s23, 1
      %p83 = por %p81, %p82
      %p84 = scmp.ne.s32.totalorder %s73, %s74
      %p85 = scmp.eq.s32.totalorder %s23, 0
      %p86 = por %p84, %p85
      %p87 = scmp.ne.s32.totalorder %s73, %s74
      %p88 = scmp.eq.s32.totalorder %s24, 1
      %p89 = por %p87, %p88
      %p91 = scmp.ne.s32.totalorder %s74, %s90
      %p92 = scmp.eq.s32.totalorder %s24, 0
      %p93 = por %p91, %p92
      %s94 = ssub.s32 %s18, %s25
      %p95 = scmp.eq.s32.totalorder %s94, 0
      %s97 = sadd.s32 %s96, 1
      %s98 = scalar_select %p95, %s96, %s97
      %p101 = pneg %p95
      %p102 = scmp.eq.s32.totalorder %s18, 1
      %p103 = por %p101, %p102
      %p104 = scmp.ne.s32.totalorder %s96, %s99
      %p105 = scmp.eq.s32.totalorder %s18, 0
      %p106 = por %p104, %p105
      %p107 = scmp.ne.s32.totalorder %s96, %s99
      %p108 = scmp.eq.s32.totalorder %s23, 1
      %p109 = por %p107, %p108
      %p110 = scmp.ne.s32.totalorder %s99, %s100
      %p111 = scmp.eq.s32.totalorder %s23, 0
      %p112 = por %p110, %p111
      %p113 = scmp.ne.s32.totalorder %s99, %s100
      %p114 = scmp.eq.s32.totalorder %s24, 1
      %p115 = por %p113, %p114
      %p117 = scmp.ne.s32.totalorder %s100, %s116
      %p118 = scmp.eq.s32.totalorder %s24, 0
      %p119 = por %p117, %p118
      %s121 = sadd.s32 %s120, 1
      %p124 = scmp.eq.s32.totalorder %s18, 1
      %p125 = scmp.ne.s32.totalorder %s120, %s122
      %p126 = scmp.eq.s32.totalorder %s18, 0
      %p127 = por %p125, %p126
      %p128 = scmp.ne.s32.totalorder %s120, %s122
      %p129 = scmp.eq.s32.totalorder %s23, 1
      %p130 = por %p128, %p129
      %p131 = scmp.ne.s32.totalorder %s122, %s123
      %p132 = scmp.eq.s32.totalorder %s23, 0
      %p133 = por %p131, %p132
      %p134 = scmp.ne.s32.totalorder %s122, %s123
      %p135 = scmp.eq.s32.totalorder %s24, 1
      %p136 = por %p134, %p135
      %p138 = scmp.ne.s32.totalorder %s123, %s137
      %p139 = scmp.eq.s32.totalorder %s24, 0
      %p140 = por %p138, %p139
      %s141 = ssub.s32 %s18, %s25
      %p142 = scmp.eq.s32.totalorder %s141, 0
      %s144 = sadd.s32 %s143, 1
      %s145 = scalar_select %p142, %s143, %s144
      %p148 = pneg %p142
      %p149 = scmp.eq.s32.totalorder %s18, 1
      %p150 = por %p148, %p149
      %p151 = scmp.ne.s32.totalorder %s143, %s146
      %p152 = scmp.eq.s32.totalorder %s18, 0
      %p153 = por %p151, %p152
      %p154 = scmp.ne.s32.totalorder %s143, %s146
      %p155 = scmp.eq.s32.totalorder %s23, 1
      %p156 = por %p154, %p155
      %p157 = scmp.ne.s32.totalorder %s146, %s147
      %p158 = scmp.eq.s32.totalorder %s23, 0
      %p159 = por %p157, %p158
      %p160 = scmp.ne.s32.totalorder %s146, %s147
      %p161 = scmp.eq.s32.totalorder %s24, 1
      %p162 = por %p160, %p161
      %p164 = scmp.ne.s32.totalorder %s147, %s163
      %p165 = scmp.eq.s32.totalorder %s24, 0
      %p166 = por %p164, %p165
      %p167 = scmp.le.s32.totalorder 1, %s18
      %p168 = scmp.lt.s32.totalorder %s18, 3
      %p169 = pnand %p167, %p168
      %p170 = pneg %p169
      // Predicated region
      $region9: #{tpu_custom_call.1} parent=5 // pred_check
        _
      $region10: #{tpu_custom_call.1} parent=5 // pred_check_branch
        %172 = sbr.rel (%p169) target = $region12
      $region11: #{tpu_custom_call.1} parent=5 // pred_region
        %s173 = ssub.s32 %s18, 1
        // Predicated region
        $region13: #{tpu_custom_call.1} parent=11 // pred_check
          %p174 = pneg %p39
        $region14: #{tpu_custom_call.1} parent=11 // pred_check_branch
          %176 = sbr.rel (%p174) target = $region16
        $region15: #{tpu_custom_call.1} parent=11 // pred_region
          _
        $region16: #{tpu_custom_call.1} parent=11 // pred_fallthru
          _
        // Predicated region
        $region17: #{tpu_custom_call.1} parent=11 // pred_check
          %p177 = pneg %p60
        $region18: #{tpu_custom_call.1} parent=11 // pred_check_branch
          %179 = sbr.rel (%p177) target = $region20
        $region19: #{tpu_custom_call.1} parent=11 // pred_region
          _
        $region20: #{tpu_custom_call.1} parent=11 // pred_fallthru
          _
        // Predicated region
        $region21: #{tpu_custom_call.1} parent=11 // pred_check
          %p180 = pneg %p133
        $region22: #{tpu_custom_call.1} parent=11 // pred_check_branch
          %182 = sbr.rel (%p180) target = $region24
        $region23: #{tpu_custom_call.1} parent=11 // pred_region
          _
        $region24: #{tpu_custom_call.1} parent=11 // pred_fallthru
          _
      $region12: #{tpu_custom_call.1} parent=5 // pred_fallthru
        _
      %p183 = scmp.lt.s32.totalorder %s18, 2
      // Predicated region
      $region25: #{tpu_custom_call.1} parent=5 // pred_check
        %p184 = pneg %p183
      $region26: #{tpu_custom_call.1} parent=5 // pred_check_branch
        %186 = sbr.rel (%p184) target = $region28
      $region27: #{tpu_custom_call.1} parent=5 // pred_region
        // Predicated region
        $region29: #{tpu_custom_call.1} parent=27 // pred_check
          %p187 = pneg %p80
        $region30: #{tpu_custom_call.1} parent=27 // pred_check_branch
          %189 = sbr.rel (%p187) target = $region32
        $region31: #{tpu_custom_call.1} parent=27 // pred_region
          %s190 = sand.u32 %s70, 1
          %s191 = scalar_lea.sflag [#allocation4], %s190
          %s192 = sand.u32 %s70, 1
          %s193 = smul.addr %s192, 128
          %s194 = scalar_lea.vmem [#allocation3], %s193
          %s195 = smul.u32 2, %s18
          %s197 = ssub.s32 2048, 2048
          %198 = vsyncadd %s191, %s197
          %s199 = smul.addr %s195, 64
          %s200 = scalar_lea.hbm %s2, %s199
          %s201 = sshll.u32 %s194, 4
          %s202 = int_to_ptr.vmem [resolvable:$true] %s201
          %207 = dma.hbm_to_vmem [thread:$0]  %s200, 2048, %s202, %s191, 256, 128, 8
        $region32: #{tpu_custom_call.1} parent=27 // pred_fallthru
          _
        // Predicated region
        $region33: #{tpu_custom_call.1} parent=27 // pred_check
          %p208 = pneg %p106
        $region34: #{tpu_custom_call.1} parent=27 // pred_check_branch
          %210 = sbr.rel (%p208) target = $region36
        $region35: #{tpu_custom_call.1} parent=27 // pred_region
          %s211 = smul.u32 2, %s18
          %p212 = scmp.lt.s32.totalorder %s211, 3
          %s213 = scalar_select %p212, %s211, 3
          %s214 = scalar_lea.vmem %s3, %s213
          %s215 = smul.u32 2, %s18
        $region36: #{tpu_custom_call.1} parent=27 // pred_fallthru
          _
      $region28: #{tpu_custom_call.1} parent=5 // pred_fallthru
        _
      %p216 = scmp.le.s32.totalorder 1, %s18
      %p217 = scmp.lt.s32.totalorder %s18, 3
      %p218 = pnand %p216, %p217
      %p219 = pneg %p218
      // Predicated region
      $region37: #{tpu_custom_call.1} parent=5 // pred_check
        _
      $region38: #{tpu_custom_call.1} parent=5 // pred_check_branch
        %221 = sbr.rel (%p218) target = $region40
      $region39: #{tpu_custom_call.1} parent=5 // pred_region
        %s222 = ssub.s32 %s18, 1
        %s223 = sand.u32 %s73, 1
        %s224 = scalar_lea.sflag [#allocation4], %s223
        %s225 = sand.u32 %s73, 1
        %s226 = smul.addr %s225, 128
        %s227 = scalar_lea.vmem [#allocation3], %s226
        // Predicated region
        $region41: #{tpu_custom_call.1} parent=39 // pred_check
          %p228 = pneg %p86
        $region42: #{tpu_custom_call.1} parent=39 // pred_check_branch
          %230 = sbr.rel (%p228) target = $region44
        $region43: #{tpu_custom_call.1} parent=39 // pred_region
          %231 = dma.done %s224, 2048
        $region44: #{tpu_custom_call.1} parent=39 // pred_fallthru
          _
        %p232 = pneg %p39
        %p233 = pneg %p36
        %p234 = pneg %p60
        %p235 = pneg %p57
        %s236 = sand.u32 %s73, 1
        %s237 = scalar_lea.sflag [#allocation4], %s236
        %s238 = sand.u32 %s73, 1
        %s239 = smul.addr %s238, 128
        %s240 = scalar_lea.vmem [#allocation3], %s239
        %p241 = pneg %p86
        %p242 = pneg %p83
        %s243 = smul.u32 2, %s23
        %p244 = scmp.lt.s32.totalorder %s243, 3
        %s245 = scalar_select %p244, %s243, 3
        %s246 = scalar_lea.vmem %s3, %s245
        %p247 = pneg %p112
        %p248 = pneg %p109
        %p249 = pneg %p133
        %p250 = pneg %p130
        %p251 = pneg %p159
        %p252 = pneg %p156
        %s253 = sand.u32 %s146, 1
        %s254 = scalar_lea.sflag [#allocation5], %s253
        %s255 = sand.u32 %s146, 1
        %s256 = smul.addr %s255, 16
        %s257 = scalar_lea.vmem [#allocation6], %s256
        %s258 = smul.u32 2, %s23
        %s259 = smul.u32 2, %s23
        %p260 = scmp.lt.s32.totalorder %s259, 3
        %s261 = scalar_select %p260, %s259, 3
        %s262 = scalar_lea.vmem %s3, %s261
        %s263 = smul.u32 2, %s23
        %s264 = smul.u32 2, %s23
        %v266 = vld [vmem:[%s1] sm:$0xf]
        %v267 = vld [vmem:[%s227] sm:$0xff]
        %v268 = vld [vmem:[%s227 + $0x8] sm:$0xff]
        %v269 = vld [vmem:[%s227 + $0x10] sm:$0xff]
        %v270 = vld [vmem:[%s227 + $0x18] sm:$0xff]
        %v271 = vld [vmem:[%s227 + $0x20] sm:$0xff]
        %v272 = vld [vmem:[%s227 + $0x28] sm:$0xff]
        %v273 = vld [vmem:[%s227 + $0x30] sm:$0xff]
        %v274 = vld [vmem:[%s227 + $0x38] sm:$0xff]
        %v275 = vld [vmem:[%s227 + $0x40] sm:$0xff]
        %v276 = vld [vmem:[%s227 + $0x48] sm:$0xff]
        %v277 = vld [vmem:[%s227 + $0x50] sm:$0xff]
        %v278 = vld [vmem:[%s227 + $0x58] sm:$0xff]
        %v279 = vld [vmem:[%s227 + $0x60] sm:$0xff]
        %v280 = vld [vmem:[%s227 + $0x68] sm:$0xff]
        %v281 = vld [vmem:[%s227 + $0x70] sm:$0xff]
        %v282 = vld [vmem:[%s227 + $0x78] sm:$0xff]
        %v283 = vld [vmem:[%s4] sm:$0xff]
        %285 = vset.pattern.permute.xlu0 0
        %286 = vperm.xlu0 %285, %v283
        %v287 = vpop.permute.xlu0 %286
        %v305 = vunpack.c.l.b16 %v267
        %v306 = vunpack.c.h.b16 %v267
        %v307 = vunpack.c.l.b16 %v268
        %v308 = vunpack.c.h.b16 %v268
        %v309 = vunpack.c.l.b16 %v269
        %v310 = vunpack.c.h.b16 %v269
        %v311 = vunpack.c.l.b16 %v270
        %v312 = vunpack.c.h.b16 %v270
        %v313 = vunpack.c.l.b16 %v271
        %v314 = vunpack.c.h.b16 %v271
        %v315 = vunpack.c.l.b16 %v272
        %v316 = vunpack.c.h.b16 %v272
        %v317 = vunpack.c.l.b16 %v273
        %v318 = vunpack.c.h.b16 %v273
        %v319 = vunpack.c.l.b16 %v274
        %v320 = vunpack.c.h.b16 %v274
        %v321 = vunpack.c.l.b16 %v275
        %v322 = vunpack.c.h.b16 %v275
        %v323 = vunpack.c.l.b16 %v276
        %v324 = vunpack.c.h.b16 %v276
        %v325 = vunpack.c.l.b16 %v277
        %v326 = vunpack.c.h.b16 %v277
        %v327 = vunpack.c.l.b16 %v278
        %v328 = vunpack.c.h.b16 %v278
        %v329 = vunpack.c.l.b16 %v279
        %v330 = vunpack.c.h.b16 %v279
        %v331 = vunpack.c.l.b16 %v280
        %v332 = vunpack.c.h.b16 %v280
        %v333 = vunpack.c.l.b16 %v281
        %v334 = vunpack.c.h.b16 %v281
        %v335 = vunpack.c.l.b16 %v282
        %v336 = vunpack.c.h.b16 %v282
        %v337 = vpack.c.b16 %v307, %v305
        %v338 = vpack.c.b16 %v308, %v306
        %v339 = vpack.c.b16 %v311, %v309
        %v340 = vpack.c.b16 %v312, %v310
        %v341 = vpack.c.b16 %v315, %v313
        %v342 = vpack.c.b16 %v316, %v314
        %v343 = vpack.c.b16 %v319, %v317
        %v344 = vpack.c.b16 %v320, %v318
        %v345 = vpack.c.b16 %v323, %v321
        %v346 = vpack.c.b16 %v324, %v322
        %v347 = vpack.c.b16 %v327, %v325
        %v348 = vpack.c.b16 %v328, %v326
        %v349 = vpack.c.b16 %v331, %v329
        %v350 = vpack.c.b16 %v332, %v330
        %v351 = vpack.c.b16 %v335, %v333
        %v352 = vpack.c.b16 %v336, %v334
        %369 = vmatprep.subr.bf16.mxu0 %v338
        %370 = vmatpush1.bf16.msra.mxu0 %v337
        %371 = vmatprep.subr.bf16.mxu0 %v340
        %372 = vmatpush1.bf16.msra.mxu0 %v339
        %373 = vmatprep.subr.bf16.mxu0 %v342
        %374 = vmatpush1.bf16.msra.mxu0 %v341
        %375 = vmatprep.subr.bf16.mxu0 %v344
        %376 = vmatpush1.bf16.msra.mxu0 %v343
        %377 = vmatprep.subr.bf16.mxu0 %v346
        %378 = vmatpush1.bf16.msra.mxu0 %v345
        %379 = vmatprep.subr.bf16.mxu0 %v348
        %380 = vmatpush1.bf16.msra.mxu0 %v347
        %381 = vmatprep.subr.bf16.mxu0 %v350
        %382 = vmatpush1.bf16.msra.mxu0 %v349
        %383 = vmatprep.subr.bf16.mxu0 %v352
        %384 = vmatpush1.bf16.msra.mxu0 %v351
        %385 = vmatprep.subr.bf16.mxu0 0
        %386 = vmatpush1.bf16.msra.mxu0 0
        %387 = vmatprep.subr.bf16.mxu0 0
        %388 = vmatpush1.bf16.msra.mxu0 0
        %389 = vmatprep.subr.bf16.mxu0 0
        %390 = vmatpush1.bf16.msra.mxu0 0
        %391 = vmatprep.subr.bf16.mxu0 0
        %392 = vmatpush1.bf16.msra.mxu0 0
        %393 = vmatprep.subr.bf16.mxu0 0
        %394 = vmatpush1.bf16.msra.mxu0 0
        %395 = vmatprep.subr.bf16.mxu0 0
        %396 = vmatpush1.bf16.msra.mxu0 0
        %397 = vmatprep.subr.bf16.mxu0 0
        %398 = vmatpush1.bf16.msra.mxu0 0
        %399 = vmatprep.subr.bf16.mxu0 0
        %400 = vmatpush1.bf16.msra.mxu0 0
        %401 = vmatprep.mubr.bf16.mxu0 0
        %402 = vmatmul.mubr.bf16.gmra.mrb[0].mxu0 %v266
        %v403 = vpop.f32.mrb[0].mxu0
        %v404 = vadd.f32 %v287, %v403
        %v405 = vpop.f32.mrb[0].mxu0
        %v406 = vadd.f32 %v287, %v405
        %v407 = vpop.f32.mrb[0].mxu0
        %v408 = vpop.f32.mrb[0].mxu0
        %409 = vdwg.mxu0
        %s410 = sld [smem:[#allocation2]]
        %v411 = vld [vmem:[%s262] sm:$0x3]
        %v412 = vstv %s410
        %v413 = vmul.f32 %v412, %v411
        %v415 = vlaneseq
        %v416 = vshrl.u32 %v415, 7
        %v417 = vsub.s32 0, %v416
        %v418 = vrot.slane %v413, %v417
        %v419 = vlaneseq
        %v420 = vshrl.u32 %v419, 7
        %v421 = vsub.s32 1, %v420
        %v422 = vrot.slane %v413, %v421
        %v425 = vadd.f32 %v404, %v418
        %v426 = vadd.f32 %v406, %v422
        %vm427 = vcmp.gt.f32.partialorder %v425, 0.0
        %vm428 = vcmp.gt.f32.partialorder %v426, 0.0
        %v429 = vmul.f32 %v425, 0.2
        %v430 = vmul.f32 %v426, 0.2
        %v431 = vsel %vm427, %v425, %v429
        %v432 = vsel %vm428, %v426, %v430
        %433 = vst [vmem:[%s257] sm:$0xff] %v431
        %434 = vst [vmem:[%s257 + $0x8] sm:$0xff] %v432
        %s435 = sand.u32 %s146, 1
        %s436 = scalar_lea.sflag [#allocation5], %s435
        %s437 = sand.u32 %s146, 1
        %s438 = smul.addr %s437, 16
        %s439 = scalar_lea.vmem [#allocation6], %s438
        // Predicated region
        $region45: #{tpu_custom_call.1} parent=39 // pred_check
          %p440 = pneg %p156
        $region46: #{tpu_custom_call.1} parent=39 // pred_check_branch
          %442 = sbr.rel (%p440) target = $region48
        $region47: #{tpu_custom_call.1} parent=39 // pred_region
          %s443 = smul.u32 2, %s23
          %s445 = ssub.s32 256, 256
          %446 = vsyncadd %s436, %s445
          %s447 = smul.addr %s443, 128
          %s448 = scalar_lea.hbm %s5, %s447
          %s450 = sshll.u32 %s439, 4
          %s451 = int_to_ptr.vmem [resolvable:$true] %s450
          %453 = dma.vmem_to_hbm [thread:$0]  %s451, 256, %s448, %s436
        $region48: #{tpu_custom_call.1} parent=39 // pred_fallthru
          _
      $region40: #{tpu_custom_call.1} parent=5 // pred_fallthru
        _
      %p454 = scmp.le.s32.totalorder 2, %s18
      // Predicated region
      $region49: #{tpu_custom_call.1} parent=5 // pred_check
        %p455 = pneg %p454
      $region50: #{tpu_custom_call.1} parent=5 // pred_check_branch
        %457 = sbr.rel (%p455) target = $region52
      $region51: #{tpu_custom_call.1} parent=5 // pred_region
        %s458 = ssub.s32 %s18, 2
        // Predicated region
        $region53: #{tpu_custom_call.1} parent=51 // pred_check
          %p459 = pneg %p162
        $region54: #{tpu_custom_call.1} parent=51 // pred_check_branch
          %461 = sbr.rel (%p459) target = $region56
        $region55: #{tpu_custom_call.1} parent=51 // pred_region
          %s462 = sand.u32 %s147, 1
          %s463 = scalar_lea.sflag [#allocation5], %s462
          %s464 = sand.u32 %s147, 1
          %s465 = smul.addr %s464, 16
          %s466 = scalar_lea.vmem [#allocation6], %s465
          %467 = dma.done %s463, 256
        $region56: #{tpu_custom_call.1} parent=51 // pred_fallthru
          _
      $region52: #{tpu_custom_call.1} parent=5 // pred_fallthru
        _
    $region6: #{tpu_custom_call.1} parent=1 // loop_footer
      %s22 = sadd.s32 1, %s18
    $region7: #{tpu_custom_call.1} parent=1 // loop_footer_branch
      %17 = sbr.rel target = $region3
    $region8: #{tpu_custom_call.1} parent=1 // loop_exit
      _
    %468 = vsyncpa [#allocation4], 1
    %s469 = scalar_lea.sflag [#allocation4], 1
    %470 = vsyncpa %s469, 1
    %471 = vsyncpa [#allocation5], 1
    %s472 = scalar_lea.sflag [#allocation5], 1
    %473 = vsyncpa %s472, 1

</llo_original>
